<compile_context>
chip_gen: v7x
topology: tpu7x:2x2x1
jax: 0.10.0
libtpu: 0.0.40
codegen_flags: <defaults>
</compile_context>

<pallas_src>
import math

import jax
import jax.numpy as jnp
from jax.experimental import pallas as pl
from jax.experimental.pallas import tpu as pltpu


def _round_up(v, m):
    return ((v + m - 1) // m) * m


def _make_eirnn_kernel(alpha, oneminusalpha):
    """Build the fused recurrent kernel with alpha baked in as compile-time consts."""

    def kernel(x_ref, wx_ref, eff_ref, b_ref, out_ref, fstate_ref, state_ref):
        t = pl.program_id(1)

        # Reset the recurrent state at the start of each batch tile's time sweep.
        @pl.when(t == 0)
        def _():
            state_ref[...] = jnp.zeros_like(state_ref)

        prev_state = state_ref[...]                                  # (BT, Hp) f32
        prev_out = jnp.maximum(prev_state, 0.0).astype(jnp.bfloat16)  # relu(state)

        # input projection + recurrent projection, both MXU with f32 accumulation.
        total = (
            jnp.dot(x_ref[0], wx_ref[...], preferred_element_type=jnp.float32)
            + jnp.dot(prev_out, eff_ref[...], preferred_element_type=jnp.float32)
            + b_ref[...]                                             # (1, Hp) bias
        )

        new_state = prev_state * oneminusalpha + total * alpha
        state_ref[...] = new_state
        out_ref[0] = jnp.maximum(new_state, 0.0)

        @pl.when(t == pl.num_programs(1) - 1)
        def _():
            fstate_ref[...] = new_state

    return kernel


def eirnn_forward(x, w_in, b_in, w_h2h, mask, b_h2h, *, alpha=1.0, batch_tile=8):
    """EIRNN forward.

    x: (T, B, I) f32, w_in: (H, I), b_in: (H,), w_h2h: (H, H), mask: (H, H), b_h2h: (H,)
    Returns (output (T, B, H), (final_state (B, H), final_output (B, H))).
    """
    T, B, I = x.shape
    H = w_h2h.shape[0]

    LANE = 128
    Hp = _round_up(H, LANE)
    Ip = _round_up(I, LANE)
    BT = max(8, _round_up(batch_tile, 8))
    Bp = _round_up(max(B, BT), BT)

    # Precompute the effective recurrent weight ONCE (mask never shipped to the
    # kernel), transposed so the kernel RHS is (H_in, H_out) = lane-dense.
    eff_T = (jnp.abs(w_h2h) * mask).T            # (H, H)
    wx_T = w_in.T                                # (I, H)
    b_total = (b_in + b_h2h).astype(jnp.float32)  # (H,)

    # Pad to hardware-friendly shapes; cast matmul operands to bf16.
    x_p = jnp.pad(x, ((0, 0), (0, Bp - B), (0, Ip - I))).astype(jnp.bfloat16)
    wx_p = jnp.pad(wx_T, ((0, Ip - I), (0, Hp - H))).astype(jnp.bfloat16)
    eff_p = jnp.pad(eff_T, ((0, Hp - H), (0, Hp - H))).astype(jnp.bfloat16)
    b_p = jnp.pad(b_total, (0, Hp - H)).reshape(1, Hp)

    kernel = _make_eirnn_kernel(float(alpha), float(1.0 - alpha))
    grid = (Bp // BT, T)

    out_p, fstate_p = pl.pallas_call(
        kernel,
        out_shape=(
            jax.ShapeDtypeStruct((T, Bp, Hp), jnp.float32),
            jax.ShapeDtypeStruct((Bp, Hp), jnp.float32),
        ),
        grid_spec=pltpu.PrefetchScalarGridSpec(
            num_scalar_prefetch=0,
            grid=grid,
            in_specs=[
                # per-timestep input tile
                pl.BlockSpec((1, BT, Ip), lambda b, t: (t, b, 0)),
                # weights / bias: constant block index -> resident in VMEM across T
                pl.BlockSpec((Ip, Hp), lambda b, t: (0, 0)),
                pl.BlockSpec((Hp, Hp), lambda b, t: (0, 0)),
                pl.BlockSpec((1, Hp), lambda b, t: (0, 0)),
            ],
            out_specs=[
                pl.BlockSpec((1, BT, Hp), lambda b, t: (t, b, 0)),
                pl.BlockSpec((BT, Hp), lambda b, t: (b, 0)),
            ],
            scratch_shapes=[pltpu.VMEM((BT, Hp), jnp.float32)],  # recurrent state
        ),
        compiler_params=pltpu.CompilerParams(
            dimension_semantics=("parallel", "arbitrary"),
            vmem_limit_bytes=32 * 1024 * 1024,
        ),
    )(x_p, wx_p, eff_p, b_p)

    output = out_p[:, :B, :H]
    final_state = fstate_p[:B, :H]
    return output, (final_state, output[-1])


def init_eirnn_params(key, input_size, hidden_size, e_prop=0.8):
    """Deterministic re-implementation of EIRNN / EIRecLinear parameter init
    (defaults: density=1, graph_type='er', ii_connectivity=1, bias=True)."""
    e_size = int(e_prop * hidden_size)
    i_size = hidden_size - e_size
    k1, k2, k3, k4 = jax.random.split(key, 4)

    # input2h = nn.Linear(input_size, hidden_size): kaiming_uniform(a=sqrt(5))
    bound_in = 1.0 / math.sqrt(input_size)
    w_in = jax.random.uniform(k1, (hidden_size, input_size), jnp.float32,
                              minval=-bound_in, maxval=bound_in)
    b_in = jax.random.uniform(k2, (hidden_size,), jnp.float32,
                              minval=-bound_in, maxval=bound_in)

    # h2h = EIRecLinear: sign mask (+1 E cols, -1 I cols, 0 diag); density=1 ER
    # graph => all-ones adjacency off-diagonal, no extra zeroing.
    col_sign = jnp.concatenate([jnp.ones((e_size,), jnp.float32),
                                -jnp.ones((i_size,), jnp.float32)])
    mask = jnp.tile(col_sign[None, :], (hidden_size, 1))
    mask = mask * (1.0 - jnp.eye(hidden_size, dtype=jnp.float32))

    bound_h = 1.0 / math.sqrt(hidden_size)
    w_h2h = jax.random.uniform(k3, (hidden_size, hidden_size), jnp.float32,
                               minval=-bound_h, maxval=bound_h)
    scale = 1.0 / e_size if i_size == 0 else 1.0 / (e_size / i_size)
    w_h2h = w_h2h.at[:, :e_size].multiply(scale)
    b_h2h = jax.random.uniform(k4, (hidden_size,), jnp.float32,
                               minval=-bound_h, maxval=bound_h)
    return w_in, b_in, w_h2h, mask, b_h2h


def eirnn_reference(x, w_in, b_in, w_h2h, mask, b_h2h, alpha):
    """Pure-JAX f32 reference matching the PyTorch EIRNN.forward (sigma_rec=0)."""
    T, B, _ = x.shape
    H = w_h2h.shape[0]
    eff = jnp.abs(w_h2h) * mask
    state = jnp.zeros((B, H), jnp.float32)
    output = jnp.zeros((B, H), jnp.float32)
    outs = []
    for t in range(T):
        total = x[t] @ w_in.T + b_in + output @ eff.T + b_h2h
        state = state * (1.0 - alpha) + total * alpha
        output = jnp.maximum(state, 0.0)
        outs.append(output)
    return jnp.stack(outs, axis=0), state


if __name__ == "__main__":
    key = jax.random.PRNGKey(0)
    k_x, k_p = jax.random.split(key)

    seq_len, batch, input_size, hidden = 8, 2, 16, 32
    dt, tau = 50.0, 100.0
    alpha = dt / tau  # exercise the leaky-integration path

    x = jax.random.normal(k_x, (seq_len, batch, input_size), jnp.float32)
    w_in, b_in, w_h2h, mask, b_h2h = init_eirnn_params(k_p, input_size, hidden,
                                                       e_prop=0.8)

    out, (state, last_out) = eirnn_forward(x, w_in, b_in, w_h2h, mask, b_h2h,
                                           alpha=alpha)
    out = jax.block_until_ready(out)

    out_ref, state_ref = eirnn_reference(x, w_in, b_in, w_h2h, mask, b_h2h, alpha)

    assert out.shape == (seq_len, batch, hidden)
    assert state.shape == (batch, hidden)
    # bf16 matmul operands with f32 accumulation -> loosened tolerance vs f32 ref.
    assert jnp.allclose(out, out_ref, atol=3e-2, rtol=3e-2)
    assert jnp.allclose(state, state_ref, atol=3e-2, rtol=3e-2)
    assert jnp.allclose(last_out, out_ref[-1], atol=3e-2, rtol=3e-2)

    print("KERNEL_OK")
</pallas_src>

<mosaic_0001>
module attributes {stable_mosaic.version = 11 : i64} {
  func.func @kernel(%arg0: i32, %arg1: i32, %arg2: memref<1x8x128xbf16, #tpu.memory_space<vmem>>, %arg3: memref<128x128xbf16, #tpu.memory_space<vmem>>, %arg4: memref<128x128xbf16, #tpu.memory_space<vmem>>, %arg5: memref<1x128xf32, #tpu.memory_space<vmem>>, %arg6: memref<1x8x128xf32, #tpu.memory_space<vmem>>, %arg7: memref<8x128xf32, #tpu.memory_space<vmem>>, %arg8: memref<8x128xf32, #tpu.memory_space<vmem>>) attributes {dimension_semantics = [#tpu.dimension_semantics<parallel>, #tpu.dimension_semantics<arbitrary>], iteration_bounds = array<i64: 1, 8>, scalar_prefetch = 0 : i64, scratch_operands = 1 : i64, tpu.core_type = #tpu.core_type<tc>, window_params = [{transform_indices = @transform_0, window_bounds = array<i64: 1, 8, 128>}, {pipeline_mode = #tpu.pipeline_mode<synchronous>, transform_indices = @transform_1, window_bounds = array<i64: 128, 128>}, {pipeline_mode = #tpu.pipeline_mode<synchronous>, transform_indices = @transform_2, window_bounds = array<i64: 128, 128>}, {pipeline_mode = #tpu.pipeline_mode<synchronous>, transform_indices = @transform_3, window_bounds = array<i64: 1, 128>}, {transform_indices = @transform_4, window_bounds = array<i64: 1, 8, 128>}, {transform_indices = @transform_5, window_bounds = array<i64: 8, 128>}]} {
    %c0_i32 = arith.constant 0 : i32
    %0 = arith.cmpi eq, %arg1, %c0_i32 : i32
    %1 = arith.extui %0 : i1 to i32
    %c0_i32_0 = arith.constant 0 : i32
    %2 = arith.cmpi ne, %1, %c0_i32_0 : i32
    scf.if %2 {
      %cst_22 = arith.constant 0.000000e+00 : f32
      %31 = vector.broadcast %cst_22 : f32 to vector<8x128xf32>
      %c0_23 = arith.constant 0 : index
      %c0_24 = arith.constant 0 : index
      %32 = vector.load %arg8[%c0_23, %c0_24] : memref<8x128xf32, #tpu.memory_space<vmem>>, vector<8x128xf32>
      tpu.vector_store %arg8[%c0_23, %c0_24], %31 {strides = array<i32>} : memref<8x128xf32, #tpu.memory_space<vmem>>, vector<8x128xf32>,
    } else {
    }
    %c0 = arith.constant 0 : index
    %c0_1 = arith.constant 0 : index
    %3 = vector.load %arg8[%c0, %c0_1] : memref<8x128xf32, #tpu.memory_space<vmem>>, vector<8x128xf32>
    %cst = arith.constant 0.000000e+00 : f32
    %4 = vector.broadcast %cst : f32 to vector<8x128xf32>
    %5 = arith.maximumf %3, %4 : vector<8x128xf32>
    %6 = arith.truncf %5 : vector<8x128xf32> to vector<8x128xbf16>
    %c0_2 = arith.constant 0 : index
    %c0_3 = arith.constant 0 : index
    %c0_4 = arith.constant 0 : index
    %7 = vector.load %arg2[%c0_2, %c0_3, %c0_4] : memref<1x8x128xbf16, #tpu.memory_space<vmem>>, vector<1x8x128xbf16>
    %8 = vector.shape_cast %7 : vector<1x8x128xbf16> to vector<8x128xbf16>
    %c0_5 = arith.constant 0 : index
    %c0_6 = arith.constant 0 : index
    %9 = vector.load %arg3[%c0_5, %c0_6] : memref<128x128xbf16, #tpu.memory_space<vmem>>, vector<128x128xbf16>
    %cst_7 = arith.constant dense<0.000000e+00> : vector<8x128xf32>
    %10 = tpu.matmul %8, %9, %cst_7 {dimension_numbers = #tpu.dot_dimension_numbers<[1], [0], [0], [1], [0, 0, 1, 1], [], []>} : vector<8x128xbf16>, vector<128x128xbf16>, vector<8x128xf32> -> vector<8x128xf32>
    %c0_8 = arith.constant 0 : index
    %c0_9 = arith.constant 0 : index
    %11 = vector.load %arg4[%c0_8, %c0_9] : memref<128x128xbf16, #tpu.memory_space<vmem>>, vector<128x128xbf16>
    %cst_10 = arith.constant dense<0.000000e+00> : vector<8x128xf32>
    %12 = tpu.matmul %6, %11, %cst_10 {dimension_numbers = #tpu.dot_dimension_numbers<[1], [0], [0], [1], [0, 0, 1, 1], [], []>} : vector<8x128xbf16>, vector<128x128xbf16>, vector<8x128xf32> -> vector<8x128xf32>
    %13 = arith.addf %10, %12 : vector<8x128xf32>
    %c0_11 = arith.constant 0 : index
    %c0_12 = arith.constant 0 : index
    %14 = vector.load %arg5[%c0_11, %c0_12] : memref<1x128xf32, #tpu.memory_space<vmem>>, vector<1x128xf32>
    %15 = vector.broadcast %14 : vector<1x128xf32> to vector<8x128xf32>
    %16 = arith.addf %13, %15 : vector<8x128xf32>
    %cst_13 = arith.constant 5.000000e-01 : f32
    %17 = vector.broadcast %cst_13 : f32 to vector<8x128xf32>
    %18 = arith.mulf %3, %17 : vector<8x128xf32>
    %cst_14 = arith.constant 5.000000e-01 : f32
    %19 = vector.broadcast %cst_14 : f32 to vector<8x128xf32>
    %20 = arith.mulf %16, %19 : vector<8x128xf32>
    %21 = arith.addf %18, %20 : vector<8x128xf32>
    %c0_15 = arith.constant 0 : index
    %c0_16 = arith.constant 0 : index
    %22 = vector.load %arg8[%c0_15, %c0_16] : memref<8x128xf32, #tpu.memory_space<vmem>>, vector<8x128xf32>
    tpu.vector_store %arg8[%c0_15, %c0_16], %21 {strides = array<i32>} : memref<8x128xf32, #tpu.memory_space<vmem>>, vector<8x128xf32>,
    %cst_17 = arith.constant 0.000000e+00 : f32
    %23 = vector.broadcast %cst_17 : f32 to vector<8x128xf32>
    %24 = arith.maximumf %21, %23 : vector<8x128xf32>
    %c0_18 = arith.constant 0 : index
    %c0_19 = arith.constant 0 : index
    %c0_20 = arith.constant 0 : index
    %25 = vector.load %arg6[%c0_18, %c0_19, %c0_20] : memref<1x8x128xf32, #tpu.memory_space<vmem>>, vector<1x8x128xf32>
    %26 = vector.shape_cast %25 : vector<1x8x128xf32> to vector<8x128xf32>
    %27 = vector.shape_cast %24 : vector<8x128xf32> to vector<1x8x128xf32>
    tpu.vector_store %arg6[%c0_18, %c0_19, %c0_20], %27 {strides = array<i32>} : memref<1x8x128xf32, #tpu.memory_space<vmem>>, vector<1x8x128xf32>,
    %c7_i32 = arith.constant 7 : i32
    %28 = arith.cmpi eq, %arg1, %c7_i32 : i32
    %29 = arith.extui %28 : i1 to i32
    %c0_i32_21 = arith.constant 0 : i32
    %30 = arith.cmpi ne, %29, %c0_i32_21 : i32
    scf.if %30 {
      %c0_22 = arith.constant 0 : index
      %c0_23 = arith.constant 0 : index
      %31 = vector.load %arg7[%c0_22, %c0_23] : memref<8x128xf32, #tpu.memory_space<vmem>>, vector<8x128xf32>
      tpu.vector_store %arg7[%c0_22, %c0_23], %21 {strides = array<i32>} : memref<8x128xf32, #tpu.memory_space<vmem>>, vector<8x128xf32>,
    } else {
    }
    return
  }
  func.func @transform_0(%arg0: i32, %arg1: i32) -> (i32, i32, i32) {
    %c0_i32 = arith.constant 0 : i32
    %c0_i32_0 = arith.constant 0 : i32
    return %arg1, %arg0, %c0_i32 : i32, i32, i32
  }
  func.func @transform_1(%arg0: i32, %arg1: i32) -> (i32, i32) {
    %c0_i32 = arith.constant 0 : i32
    %c0_i32_0 = arith.constant 0 : i32
    %c0_i32_1 = arith.constant 0 : i32
    return %c0_i32, %c0_i32_0 : i32, i32
  }
  func.func @transform_2(%arg0: i32, %arg1: i32) -> (i32, i32) {
    %c0_i32 = arith.constant 0 : i32
    %c0_i32_0 = arith.constant 0 : i32
    %c0_i32_1 = arith.constant 0 : i32
    return %c0_i32, %c0_i32_0 : i32, i32
  }
  func.func @transform_3(%arg0: i32, %arg1: i32) -> (i32, i32) {
    %c0_i32 = arith.constant 0 : i32
    %c0_i32_0 = arith.constant 0 : i32
    %c0_i32_1 = arith.constant 0 : i32
    return %c0_i32, %c0_i32_0 : i32, i32
  }
  func.func @transform_4(%arg0: i32, %arg1: i32) -> (i32, i32, i32) {
    %c0_i32 = arith.constant 0 : i32
    %c0_i32_0 = arith.constant 0 : i32
    return %arg1, %arg0, %c0_i32 : i32, i32, i32
  }
  func.func @transform_5(%arg0: i32, %arg1: i32) -> (i32, i32) {
    %c0_i32 = arith.constant 0 : i32
    %c0_i32_0 = arith.constant 0 : i32
    return %arg0, %c0_i32 : i32, i32
  }
}

</mosaic_0001>

<llo_original>
// kernel: tpu_custom_call.1
$region0: #{tpu_custom_call.1}
  #allocation0 [shape = 'u32[]', space=smem, size = 0x4, offset = 0x4, fixed_abs, tag = 'smem constant byte address 0x4 - core index']
  #allocation1 [shape = 'u32[144,128]{1,0:T(1,128)}', space=vmem, size = 0x12000, scoped, tag = 'internal scratch']
  #allocation2 [shape = 'f32[8,128]{1,0:T(8,128)}', space=vmem, size = 0x1000, scoped, tag = 'scratch operand']
  %s0 = inlined_call_operand.hbm [shape: bf16[8,8,128], index: 0, kind: input, shape index: {}]
  %s1 = inlined_call_operand.hbm [shape: bf16[128,128], index: 1, kind: input, shape index: {}]
  %s2 = inlined_call_operand.hbm [shape: bf16[128,128], index: 2, kind: input, shape index: {}]
  %s3 = inlined_call_operand.vmem [shape: f32[1,128], index: 3, kind: input, shape index: {}]
  %s4 = inlined_call_operand.hbm [shape: f32[8,8,128], index: 4, kind: output, shape index: {0}]
  %s5 = inlined_call_operand.hbm [shape: f32[8,128], index: 5, kind: output, shape index: {1}]
  %6 = xla_tuple %s4, %s5
  %s7 = sld [smem:[#allocation0]]
  $region77: #{tpu_custom_call.1} parent=0
    _
  %s9 = ssub.s32 1, %s7
  %s10 = scalar_select 0, %s9, %s7
  $region1: #{tpu_custom_call.1} parent=0
    #allocation3 [shape = 'u8[4096]{0}', space=vmem, size = 0x1000, scoped, tag = 'input window, operand 0']
    #allocation4 [shape = 's32[2]{0}', space=sflag, size = 0x8, scoped, tag = 'scoped memory for tpu_custom_call.1']
    #allocation5 [shape = 's32[2]{0}', space=sflag, size = 0x8, scoped, tag = 'scoped memory for tpu_custom_call.1']
    #allocation6 [shape = 'u8[32768]{0}', space=vmem, size = 0x8000, scoped, tag = 'input window, operand 1, single buffered']
    #allocation7 [shape = 's32[1]{0}', space=sflag, size = 0x4, scoped, tag = 'scoped memory for tpu_custom_call.1']
    #allocation8 [shape = 'u8[32768]{0}', space=vmem, size = 0x8000, scoped, tag = 'input window, operand 2, single buffered']
    #allocation9 [shape = 'u8[8192]{0}', space=vmem, size = 0x2000, scoped, tag = 'output window, operand 0']
    #allocation10 [shape = 'u8[4096]{0}', space=vmem, size = 0x1000, scoped, tag = 'output window, operand 1, single buffered']
    #allocation11 [shape = 's32[1]{0}', space=sflag, size = 0x4, scoped, tag = 'scoped memory for tpu_custom_call.1']
    %11 = vsyncpa [#allocation4], 0
    %s12 = scalar_lea.sflag [#allocation4], 1
    %13 = vsyncpa %s12, 0
    %14 = vsyncpa [#allocation7], 0
    %15 = vsyncpa [#allocation5], 0
    %s16 = scalar_lea.sflag [#allocation5], 1
    %17 = vsyncpa %s16, 0
    %18 = vsyncpa [#allocation11], 0
    loop: start=0, step=1, limit=10
    $region2: #{tpu_custom_call.1} parent=1 // loop_pre_header
      _
    $region3: #{tpu_custom_call.1} parent=1 // loop_header
      %s20 = sphi 0, %s24
      %p21 = scmp.ge.s32.totalorder %s20, 10
      %s27 = sphi 0, %s39
      %s28 = sphi 0, %s35
      %s29 = sphi 0, %s27
      %s30 = sphi 0, %s28
      %s31 = sphi 0, %s29
      %s32 = sphi 0, %s30
      %s44 = sphi 0, %s46
      %s47 = sphi 0, %s44
      %s48 = sphi 0, %s47
      %s64 = sphi 0, %s48
      %s68 = sphi 0, %s68
      %s70 = sphi 0, %s68
      %s71 = sphi 0, %s70
      %s85 = sphi 0, %s71
      %s89 = sphi 0, %s89
      %s91 = sphi 0, %s89
      %s92 = sphi 0, %s91
      %s106 = sphi 0, %s92
      %s110 = sphi 0, %s110
      %s112 = sphi 0, %s110
      %s113 = sphi 0, %s112
      %s127 = sphi 0, %s113
      %s135 = sphi 0, %s137
      %s138 = sphi 0, %s135
      %s139 = sphi 0, %s138
      %s155 = sphi 0, %s139
      %s161 = sphi 0, %s163
      %s164 = sphi 0, %s161
      %s165 = sphi 0, %s164
      %s181 = sphi 0, %s165
    $region4: #{tpu_custom_call.1} parent=1 // loop_header_branch
      %23 = sbr.rel (%p21) target = $region8
    $region5: #{tpu_custom_call.1} parent=1 // loop_body
      %s25 = ssub.s32 %s20, 1
      %s26 = ssub.s32 %s20, 2
      %s33 = sadd.s32 1, %s28
      %p34 = scmp.ge.s32.totalorder %s33, 8
      %s35 = scalar_select %p34, 0, %s33
      %s36 = sadd.s32 1, %s27
      %s37 = scalar_select %p34, %s36, %s27
      %p38 = scmp.ge.s32.totalorder %s37, 1
      %s39 = scalar_select %p38, 0, %s37
      %s40 = ssub.s32 %s28, %s35
      %s41 = ssub.s32 %s27, %s39
      %s42 = sor.u32 %s40, %s41
      %p43 = scmp.eq.s32.totalorder %s42, 0
      %s45 = sadd.s32 %s44, 1
      %s46 = scalar_select %p43, %s44, %s45
      %p49 = pneg %p43
      %p50 = scmp.eq.s32.totalorder %s20, 7
      %p51 = por %p49, %p50
      %p52 = scmp.ne.s32.totalorder %s44, %s47
      %p53 = scmp.eq.s32.totalorder %s20, 0
      %p54 = por %p52, %p53
      %p55 = scmp.ne.s32.totalorder %s44, %s47
      %p56 = scmp.eq.s32.totalorder %s25, 7
      %p57 = por %p55, %p56
      %p58 = scmp.ne.s32.totalorder %s47, %s48
      %p59 = scmp.eq.s32.totalorder %s25, 0
      %p60 = por %p58, %p59
      %p61 = scmp.ne.s32.totalorder %s47, %s48
      %p62 = scmp.eq.s32.totalorder %s26, 7
      %p63 = por %p61, %p62
      %p65 = scmp.ne.s32.totalorder %s48, %s64
      %p66 = scmp.eq.s32.totalorder %s26, 0
      %p67 = por %p65, %p66
      %s69 = sadd.s32 %s68, 1
      %p72 = scmp.eq.s32.totalorder %s20, 7
      %p73 = scmp.ne.s32.totalorder %s68, %s70
      %p74 = scmp.eq.s32.totalorder %s20, 0
      %p75 = por %p73, %p74
      %p76 = scmp.ne.s32.totalorder %s68, %s70
      %p77 = scmp.eq.s32.totalorder %s25, 7
      %p78 = por %p76, %p77
      %p79 = scmp.ne.s32.totalorder %s70, %s71
      %p80 = scmp.eq.s32.totalorder %s25, 0
      %p81 = por %p79, %p80
      %p82 = scmp.ne.s32.totalorder %s70, %s71
      %p83 = scmp.eq.s32.totalorder %s26, 7
      %p84 = por %p82, %p83
      %p86 = scmp.ne.s32.totalorder %s71, %s85
      %p87 = scmp.eq.s32.totalorder %s26, 0
      %p88 = por %p86, %p87
      %s90 = sadd.s32 %s89, 1
      %p93 = scmp.eq.s32.totalorder %s20, 7
      %p94 = scmp.ne.s32.totalorder %s89, %s91
      %p95 = scmp.eq.s32.totalorder %s20, 0
      %p96 = por %p94, %p95
      %p97 = scmp.ne.s32.totalorder %s89, %s91
      %p98 = scmp.eq.s32.totalorder %s25, 7
      %p99 = por %p97, %p98
      %p100 = scmp.ne.s32.totalorder %s91, %s92
      %p101 = scmp.eq.s32.totalorder %s25, 0
      %p102 = por %p100, %p101
      %p103 = scmp.ne.s32.totalorder %s91, %s92
      %p104 = scmp.eq.s32.totalorder %s26, 7
      %p105 = por %p103, %p104
      %p107 = scmp.ne.s32.totalorder %s92, %s106
      %p108 = scmp.eq.s32.totalorder %s26, 0
      %p109 = por %p107, %p108
      %s111 = sadd.s32 %s110, 1
      %p114 = scmp.eq.s32.totalorder %s20, 7
      %p115 = scmp.ne.s32.totalorder %s110, %s112
      %p116 = scmp.eq.s32.totalorder %s20, 0
      %p117 = por %p115, %p116
      %p118 = scmp.ne.s32.totalorder %s110, %s112
      %p119 = scmp.eq.s32.totalorder %s25, 7
      %p120 = por %p118, %p119
      %p121 = scmp.ne.s32.totalorder %s112, %s113
      %p122 = scmp.eq.s32.totalorder %s25, 0
      %p123 = por %p121, %p122
      %p124 = scmp.ne.s32.totalorder %s112, %s113
      %p125 = scmp.eq.s32.totalorder %s26, 7
      %p126 = por %p124, %p125
      %p128 = scmp.ne.s32.totalorder %s113, %s127
      %p129 = scmp.eq.s32.totalorder %s26, 0
      %p130 = por %p128, %p129
      %s131 = ssub.s32 %s28, %s35
      %s132 = ssub.s32 %s27, %s39
      %s133 = sor.u32 %s131, %s132
      %p134 = scmp.eq.s32.totalorder %s133, 0
      %s136 = sadd.s32 %s135, 1
      %s137 = scalar_select %p134, %s135, %s136
      %p140 = pneg %p134
      %p141 = scmp.eq.s32.totalorder %s20, 7
      %p142 = por %p140, %p141
      %p143 = scmp.ne.s32.totalorder %s135, %s138
      %p144 = scmp.eq.s32.totalorder %s20, 0
      %p145 = por %p143, %p144
      %p146 = scmp.ne.s32.totalorder %s135, %s138
      %p147 = scmp.eq.s32.totalorder %s25, 7
      %p148 = por %p146, %p147
      %p149 = scmp.ne.s32.totalorder %s138, %s139
      %p150 = scmp.eq.s32.totalorder %s25, 0
      %p151 = por %p149, %p150
      %p152 = scmp.ne.s32.totalorder %s138, %s139
      %p153 = scmp.eq.s32.totalorder %s26, 7
      %p154 = por %p152, %p153
      %p156 = scmp.ne.s32.totalorder %s139, %s155
      %p157 = scmp.eq.s32.totalorder %s26, 0
      %p158 = por %p156, %p157
      %s159 = ssub.s32 %s27, %s39
      %p160 = scmp.eq.s32.totalorder %s159, 0
      %s162 = sadd.s32 %s161, 1
      %s163 = scalar_select %p160, %s161, %s162
      %p166 = pneg %p160
      %p167 = scmp.eq.s32.totalorder %s20, 7
      %p168 = por %p166, %p167
      %p169 = scmp.ne.s32.totalorder %s161, %s164
      %p170 = scmp.eq.s32.totalorder %s20, 0
      %p171 = por %p169, %p170
      %p172 = scmp.ne.s32.totalorder %s161, %s164
      %p173 = scmp.eq.s32.totalorder %s25, 7
      %p174 = por %p172, %p173
      %p175 = scmp.ne.s32.totalorder %s164, %s165
      %p176 = scmp.eq.s32.totalorder %s25, 0
      %p177 = por %p175, %p176
      %p178 = scmp.ne.s32.totalorder %s164, %s165
      %p179 = scmp.eq.s32.totalorder %s26, 7
      %p180 = por %p178, %p179
      %p182 = scmp.ne.s32.totalorder %s165, %s181
      %p183 = scmp.eq.s32.totalorder %s26, 0
      %p184 = por %p182, %p183
      %p185 = scmp.le.s32.totalorder 1, %s20
      %p186 = scmp.lt.s32.totalorder %s20, 9
      %p187 = pnand %p185, %p186
      %p188 = pneg %p187
      // Predicated region
      $region9: #{tpu_custom_call.1} parent=5 // pred_check
        _
      $region10: #{tpu_custom_call.1} parent=5 // pred_check_branch
        %190 = sbr.rel (%p187) target = $region12
      $region11: #{tpu_custom_call.1} parent=5 // pred_region
        %s191 = ssub.s32 %s20, 1
        // Predicated region
        $region13: #{tpu_custom_call.1} parent=11 // pred_check
          %p192 = pneg %p81
        $region14: #{tpu_custom_call.1} parent=11 // pred_check_branch
          %194 = sbr.rel (%p192) target = $region16
        $region15: #{tpu_custom_call.1} parent=11 // pred_region
          %s196 = ssub.s32 1024, 1024
          %197 = vsyncadd [#allocation7], %s196
          %s198 = sshll.u32 [#allocation6], 4
          %s199 = int_to_ptr.vmem [resolvable:$true] %s198
          %204 = dma.hbm_to_vmem [thread:$0]  %s1, 1024, %s199, [#allocation7], 64, 64, 4
        $region16: #{tpu_custom_call.1} parent=11 // pred_fallthru
          _
        // Predicated region
        $region17: #{tpu_custom_call.1} parent=11 // pred_check
          %p205 = pneg %p102
        $region18: #{tpu_custom_call.1} parent=11 // pred_check_branch
          %207 = sbr.rel (%p205) target = $region20
        $region19: #{tpu_custom_call.1} parent=11 // pred_region
          %s209 = ssub.s32 1024, 1024
          %210 = vsyncadd [#allocation7], %s209
          %s211 = sshll.u32 [#allocation8], 4
          %s212 = int_to_ptr.vmem [resolvable:$true] %s211
          %217 = dma.hbm_to_vmem [thread:$0]  %s2, 1024, %s212, [#allocation7], 64, 64, 4
        $region20: #{tpu_custom_call.1} parent=11 // pred_fallthru
          _
        // Predicated region
        $region21: #{tpu_custom_call.1} parent=11 // pred_check
          %p218 = pneg %p123
        $region22: #{tpu_custom_call.1} parent=11 // pred_check_branch
          %220 = sbr.rel (%p218) target = $region24
        $region23: #{tpu_custom_call.1} parent=11 // pred_region
          _
        $region24: #{tpu_custom_call.1} parent=11 // pred_fallthru
          _
      $region12: #{tpu_custom_call.1} parent=5 // pred_fallthru
        _
      %p221 = scmp.lt.s32.totalorder %s20, 8
      // Predicated region
      $region25: #{tpu_custom_call.1} parent=5 // pred_check
        %p222 = pneg %p221
      $region26: #{tpu_custom_call.1} parent=5 // pred_check_branch
        %224 = sbr.rel (%p222) target = $region28
      $region27: #{tpu_custom_call.1} parent=5 // pred_region
        // Predicated region
        $region29: #{tpu_custom_call.1} parent=27 // pred_check
          %p225 = pneg %p54
        $region30: #{tpu_custom_call.1} parent=27 // pred_check_branch
          %227 = sbr.rel (%p225) target = $region32
        $region31: #{tpu_custom_call.1} parent=27 // pred_region
          %s228 = sand.u32 %s44, 1
          %s229 = scalar_lea.sflag [#allocation4], %s228
          %s230 = sand.u32 %s44, 1
          %s231 = smul.addr %s230, 4
          %s232 = scalar_lea.vmem [#allocation3], %s231
          %s234 = ssub.s32 64, 64
          %235 = vsyncadd %s229, %s234
          %s236 = sadd.s32 %s27, %s28
          %s237 = smul.addr %s236, 64
          %s238 = scalar_lea.hbm %s0, %s237
          %s240 = sshll.u32 %s232, 4
          %s241 = int_to_ptr.vmem [resolvable:$true] %s240
          %243 = dma.hbm_to_vmem [thread:$0]  %s238, 64, %s241, %s229
        $region32: #{tpu_custom_call.1} parent=27 // pred_fallthru
          _
      $region28: #{tpu_custom_call.1} parent=5 // pred_fallthru
        _
      %p244 = scmp.le.s32.totalorder 1, %s20
      %p245 = scmp.lt.s32.totalorder %s20, 9
      %p246 = pnand %p244, %p245
      %p247 = pneg %p246
      // Predicated region
      $region33: #{tpu_custom_call.1} parent=5 // pred_check
        _
      $region34: #{tpu_custom_call.1} parent=5 // pred_check_branch
        %249 = sbr.rel (%p246) target = $region36
      $region35: #{tpu_custom_call.1} parent=5 // pred_region
        %s250 = ssub.s32 %s20, 1
        %s251 = sand.u32 %s47, 1
        %s252 = scalar_lea.sflag [#allocation4], %s251
        %s253 = sand.u32 %s47, 1
        %s254 = smul.addr %s253, 4
        %s255 = scalar_lea.vmem [#allocation3], %s254
        // Predicated region
        $region37: #{tpu_custom_call.1} parent=35 // pred_check
          %p256 = pneg %p60
        $region38: #{tpu_custom_call.1} parent=35 // pred_check_branch
          %258 = sbr.rel (%p256) target = $region40
        $region39: #{tpu_custom_call.1} parent=35 // pred_region
          %259 = dma.done %s252, 64
        $region40: #{tpu_custom_call.1} parent=35 // pred_fallthru
          _
        // Predicated region
        $region41: #{tpu_custom_call.1} parent=35 // pred_check
          %p260 = pneg %p81
        $region42: #{tpu_custom_call.1} parent=35 // pred_check_branch
          %262 = sbr.rel (%p260) target = $region44
        $region43: #{tpu_custom_call.1} parent=35 // pred_region
          %263 = dma.done [#allocation7], 1024
        $region44: #{tpu_custom_call.1} parent=35 // pred_fallthru
          _
        // Predicated region
        $region45: #{tpu_custom_call.1} parent=35 // pred_check
          %p264 = pneg %p102
        $region46: #{tpu_custom_call.1} parent=35 // pred_check_branch
          %266 = sbr.rel (%p264) target = $region48
        $region47: #{tpu_custom_call.1} parent=35 // pred_region
          %267 = dma.done [#allocation7], 1024
        $region48: #{tpu_custom_call.1} parent=35 // pred_fallthru
          _
        %s268 = sand.u32 %s47, 1
        %s269 = scalar_lea.sflag [#allocation4], %s268
        %s270 = sand.u32 %s47, 1
        %s271 = smul.addr %s270, 4
        %s272 = scalar_lea.vmem [#allocation3], %s271
        %p273 = pneg %p60
        %p274 = pneg %p57
        %p275 = pneg %p81
        %p276 = pneg %p78
        %p277 = pneg %p102
        %p278 = pneg %p99
        %p279 = pneg %p123
        %p280 = pneg %p120
        %p281 = pneg %p151
        %p282 = pneg %p148
        %s283 = sand.u32 %s138, 1
        %s284 = scalar_lea.sflag [#allocation5], %s283
        %s285 = sand.u32 %s138, 1
        %s286 = smul.addr %s285, 8
        %s287 = scalar_lea.vmem [#allocation9], %s286
        %p288 = pneg %p177
        %p289 = pneg %p174
        %p291 = scmp.eq.s32.totalorder %s30, 0
        // Predicated region
        $region49: #{tpu_custom_call.1} parent=35 // pred_check
          %p292 = pneg %p291
        $region50: #{tpu_custom_call.1} parent=35 // pred_check_branch
          %294 = sbr.rel (%p292) target = $region52
        $region51: #{tpu_custom_call.1} parent=35 // pred_region
          %295 = vst [vmem:[#allocation2] sm:$0xff] 0.0
        $region52: #{tpu_custom_call.1} parent=35 // pred_fallthru
          _
        %v296 = vld [vmem:[#allocation2] sm:$0xff]
        %v297 = vmax.f32 %v296, 0.0
        %v298 = vpack.c.bf16 %v297, %v297
        %v299 = vld [vmem:[%s255] sm:$0xf]
        %v300 = vld [vmem:[#allocation6] sm:$0xf]
        %v301 = vld [vmem:[#allocation6 + $0x4] sm:$0xf]
        %v302 = vld [vmem:[#allocation6 + $0x8] sm:$0xf]
        %v303 = vld [vmem:[#allocation6 + $0xc] sm:$0xf]
        %v304 = vld [vmem:[#allocation6 + $0x10] sm:$0xf]
        %v305 = vld [vmem:[#allocation6 + $0x14] sm:$0xf]
        %v306 = vld [vmem:[#allocation6 + $0x18] sm:$0xf]
        %v307 = vld [vmem:[#allocation6 + $0x1c] sm:$0xf]
        %v308 = vld [vmem:[#allocation6 + $0x20] sm:$0xf]
        %v309 = vld [vmem:[#allocation6 + $0x24] sm:$0xf]
        %v310 = vld [vmem:[#allocation6 + $0x28] sm:$0xf]
        %v311 = vld [vmem:[#allocation6 + $0x2c] sm:$0xf]
        %v312 = vld [vmem:[#allocation6 + $0x30] sm:$0xf]
        %v313 = vld [vmem:[#allocation6 + $0x34] sm:$0xf]
        %v314 = vld [vmem:[#allocation6 + $0x38] sm:$0xf]
        %v315 = vld [vmem:[#allocation6 + $0x3c] sm:$0xf]
        %v316 = vld [vmem:[#allocation8] sm:$0xf]
        %v317 = vld [vmem:[#allocation8 + $0x4] sm:$0xf]
        %v318 = vld [vmem:[#allocation8 + $0x8] sm:$0xf]
        %v319 = vld [vmem:[#allocation8 + $0xc] sm:$0xf]
        %v320 = vld [vmem:[#allocation8 + $0x10] sm:$0xf]
        %v321 = vld [vmem:[#allocation8 + $0x14] sm:$0xf]
        %v322 = vld [vmem:[#allocation8 + $0x18] sm:$0xf]
        %v323 = vld [vmem:[#allocation8 + $0x1c] sm:$0xf]
        %v324 = vld [vmem:[#allocation8 + $0x20] sm:$0xf]
        %v325 = vld [vmem:[#allocation8 + $0x24] sm:$0xf]
        %v326 = vld [vmem:[#allocation8 + $0x28] sm:$0xf]
        %v327 = vld [vmem:[#allocation8 + $0x2c] sm:$0xf]
        %v328 = vld [vmem:[#allocation8 + $0x30] sm:$0xf]
        %v329 = vld [vmem:[#allocation8 + $0x34] sm:$0xf]
        %v330 = vld [vmem:[#allocation8 + $0x38] sm:$0xf]
        %v331 = vld [vmem:[#allocation8 + $0x3c] sm:$0xf]
        %v348 = vunpack.c.l.b16 %v316
        %v349 = vunpack.c.l.b16 %v317
        %v350 = vunpack.c.l.b16 %v318
        %v351 = vunpack.c.l.b16 %v319
        %v352 = vunpack.c.l.b16 %v320
        %v353 = vunpack.c.l.b16 %v321
        %v354 = vunpack.c.l.b16 %v322
        %v355 = vunpack.c.l.b16 %v323
        %v356 = vunpack.c.l.b16 %v324
        %v357 = vunpack.c.l.b16 %v325
        %v358 = vunpack.c.l.b16 %v326
        %v359 = vunpack.c.l.b16 %v327
        %v360 = vunpack.c.l.b16 %v328
        %v361 = vunpack.c.l.b16 %v329
        %v362 = vunpack.c.l.b16 %v330
        %v363 = vunpack.c.l.b16 %v331
        %v364 = vpack.c.b16 %v349, %v348
        %v365 = vpack.c.b16 %v351, %v350
        %v366 = vpack.c.b16 %v353, %v352
        %v367 = vpack.c.b16 %v355, %v354
        %v368 = vpack.c.b16 %v357, %v356
        %v369 = vpack.c.b16 %v359, %v358
        %v370 = vpack.c.b16 %v361, %v360
        %v371 = vpack.c.b16 %v363, %v362
        %380 = vmatprep.subr.bf16.mxu0 0
        %381 = vmatpush1.bf16.msra.mxu0 %v364
        %382 = vmatprep.subr.bf16.mxu0 0
        %383 = vmatpush1.bf16.msra.mxu0 %v365
        %384 = vmatprep.subr.bf16.mxu0 0
        %385 = vmatpush1.bf16.msra.mxu0 %v366
        %386 = vmatprep.subr.bf16.mxu0 0
        %387 = vmatpush1.bf16.msra.mxu0 %v367
        %388 = vmatprep.subr.bf16.mxu0 0
        %389 = vmatpush1.bf16.msra.mxu0 %v368
        %390 = vmatprep.subr.bf16.mxu0 0
        %391 = vmatpush1.bf16.msra.mxu0 %v369
        %392 = vmatprep.subr.bf16.mxu0 0
        %393 = vmatpush1.bf16.msra.mxu0 %v370
        %394 = vmatprep.subr.bf16.mxu0 0
        %395 = vmatpush1.bf16.msra.mxu0 %v371
        %396 = vmatprep.subr.bf16.mxu0 0
        %397 = vmatpush1.bf16.msra.mxu0 0
        %398 = vmatprep.subr.bf16.mxu0 0
        %399 = vmatpush1.bf16.msra.mxu0 0
        %400 = vmatprep.subr.bf16.mxu0 0
        %401 = vmatpush1.bf16.msra.mxu0 0
        %402 = vmatprep.subr.bf16.mxu0 0
        %403 = vmatpush1.bf16.msra.mxu0 0
        %404 = vmatprep.subr.bf16.mxu0 0
        %405 = vmatpush1.bf16.msra.mxu0 0
        %406 = vmatprep.subr.bf16.mxu0 0
        %407 = vmatpush1.bf16.msra.mxu0 0
        %408 = vmatprep.subr.bf16.mxu0 0
        %409 = vmatpush1.bf16.msra.mxu0 0
        %410 = vmatprep.subr.bf16.mxu0 0
        %411 = vmatpush1.bf16.msra.mxu0 0
        %412 = vmatprep.mubr.bf16.mxu0 0
        %413 = vmatmul.mubr.bf16.gmra.mrb[0].mxu0 %v298
        %v414 = vpop.f32.mrb[0].mxu0
        %v415 = vadd.f32 0.0, %v414
        %v416 = vpop.f32.mrb[0].mxu0
        %v417 = vpop.f32.mrb[0].mxu0
        %v418 = vpop.f32.mrb[0].mxu0
        %419 = vdwg.mxu0
        %v436 = vunpack.c.l.b16 %v300
        %v437 = vunpack.c.l.b16 %v301
        %v438 = vunpack.c.l.b16 %v302
        %v439 = vunpack.c.l.b16 %v303
        %v440 = vunpack.c.l.b16 %v304
        %v441 = vunpack.c.l.b16 %v305
        %v442 = vunpack.c.l.b16 %v306
        %v443 = vunpack.c.l.b16 %v307
        %v444 = vunpack.c.l.b16 %v308
        %v445 = vunpack.c.l.b16 %v309
        %v446 = vunpack.c.l.b16 %v310
        %v447 = vunpack.c.l.b16 %v311
        %v448 = vunpack.c.l.b16 %v312
        %v449 = vunpack.c.l.b16 %v313
        %v450 = vunpack.c.l.b16 %v314
        %v451 = vunpack.c.l.b16 %v315
        %v452 = vpack.c.b16 %v437, %v436
        %v453 = vpack.c.b16 %v439, %v438
        %v454 = vpack.c.b16 %v441, %v440
        %v455 = vpack.c.b16 %v443, %v442
        %v456 = vpack.c.b16 %v445, %v444
        %v457 = vpack.c.b16 %v447, %v446
        %v458 = vpack.c.b16 %v449, %v448
        %v459 = vpack.c.b16 %v451, %v450
        %468 = vmatprep.subr.bf16.mxu0 0
        %469 = vmatpush1.bf16.msra.mxu0 %v452
        %470 = vmatprep.subr.bf16.mxu0 0
        %471 = vmatpush1.bf16.msra.mxu0 %v453
        %472 = vmatprep.subr.bf16.mxu0 0
        %473 = vmatpush1.bf16.msra.mxu0 %v454
        %474 = vmatprep.subr.bf16.mxu0 0
        %475 = vmatpush1.bf16.msra.mxu0 %v455
        %476 = vmatprep.subr.bf16.mxu0 0
        %477 = vmatpush1.bf16.msra.mxu0 %v456
        %478 = vmatprep.subr.bf16.mxu0 0
        %479 = vmatpush1.bf16.msra.mxu0 %v457
        %480 = vmatprep.subr.bf16.mxu0 0
        %481 = vmatpush1.bf16.msra.mxu0 %v458
        %482 = vmatprep.subr.bf16.mxu0 0
        %483 = vmatpush1.bf16.msra.mxu0 %v459
        %484 = vmatprep.subr.bf16.mxu0 0
        %485 = vmatpush1.bf16.msra.mxu0 0
        %486 = vmatprep.subr.bf16.mxu0 0
        %487 = vmatpush1.bf16.msra.mxu0 0
        %488 = vmatprep.subr.bf16.mxu0 0
        %489 = vmatpush1.bf16.msra.mxu0 0
        %490 = vmatprep.subr.bf16.mxu0 0
        %491 = vmatpush1.bf16.msra.mxu0 0
        %492 = vmatprep.subr.bf16.mxu0 0
        %493 = vmatpush1.bf16.msra.mxu0 0
        %494 = vmatprep.subr.bf16.mxu0 0
        %495 = vmatpush1.bf16.msra.mxu0 0
        %496 = vmatprep.subr.bf16.mxu0 0
        %497 = vmatpush1.bf16.msra.mxu0 0
        %498 = vmatprep.subr.bf16.mxu0 0
        %499 = vmatpush1.bf16.msra.mxu0 0
        %500 = vmatprep.mubr.bf16.mxu0 0
        %501 = vmatmul.mubr.bf16.gmra.mrb[0].mxu0 %v299
        %v502 = vpop.f32.mrb[0].mxu0
        %v503 = vadd.f32 %v415, %v502
        %v504 = vpop.f32.mrb[0].mxu0
        %v505 = vpop.f32.mrb[0].mxu0
        %v506 = vpop.f32.mrb[0].mxu0
        %507 = vdwg.mxu0
        %v508 = vld [vmem:[%s3] sm:$0x1]
        %v510 = vlaneseq
        %v511 = vshrl.u32 %v510, 7
        %v512 = vsub.s32 0, %v511
        %v513 = vrot.slane %v508, %v512
        %v515 = vadd.f32 %v503, %v513
        %v516 = vmul.f32 %v296, 0.5
        %v517 = vmul.f32 %v515, 0.5
        %v518 = vadd.f32 %v516, %v517
        %519 = vst [vmem:[#allocation2] sm:$0xff] %v518
        %v520 = vmax.f32 %v518, 0.0
        %521 = vst [vmem:[%s287] sm:$0xff] %v520
        %p522 = scmp.eq.s32.totalorder %s30, 7
        // Predicated region
        $region53: #{tpu_custom_call.1} parent=35 // pred_check
          %p523 = pneg %p522
        $region54: #{tpu_custom_call.1} parent=35 // pred_check_branch
          %525 = sbr.rel (%p523) target = $region56
        $region55: #{tpu_custom_call.1} parent=35 // pred_region
          %526 = vst [vmem:[#allocation10] sm:$0xff] %v518
        $region56: #{tpu_custom_call.1} parent=35 // pred_fallthru
          _
        %s527 = sand.u32 %s138, 1
        %s528 = scalar_lea.sflag [#allocation5], %s527
        %s529 = sand.u32 %s138, 1
        %s530 = smul.addr %s529, 8
        %s531 = scalar_lea.vmem [#allocation9], %s530
        // Predicated region
        $region57: #{tpu_custom_call.1} parent=35 // pred_check
          %p532 = pneg %p148
        $region58: #{tpu_custom_call.1} parent=35 // pred_check_branch
          %534 = sbr.rel (%p532) target = $region60
        $region59: #{tpu_custom_call.1} parent=35 // pred_region
          %s536 = ssub.s32 128, 128
          %537 = vsyncadd %s528, %s536
          %s538 = sadd.s32 %s29, %s30
          %s539 = smul.addr %s538, 128
          %s540 = scalar_lea.hbm %s4, %s539
          %s542 = sshll.u32 %s531, 4
          %s543 = int_to_ptr.vmem [resolvable:$true] %s542
          %545 = dma.vmem_to_hbm [thread:$0]  %s543, 128, %s540, %s528
        $region60: #{tpu_custom_call.1} parent=35 // pred_fallthru
          _
        // Predicated region
        $region61: #{tpu_custom_call.1} parent=35 // pred_check
          %p546 = pneg %p174
        $region62: #{tpu_custom_call.1} parent=35 // pred_check_branch
          %548 = sbr.rel (%p546) target = $region64
        $region63: #{tpu_custom_call.1} parent=35 // pred_region
          %s550 = ssub.s32 128, 128
          %551 = vsyncadd [#allocation11], %s550
          %s552 = smul.addr %s29, 128
          %s553 = scalar_lea.hbm %s5, %s552
          %s555 = sshll.u32 [#allocation10], 4
          %s556 = int_to_ptr.vmem [resolvable:$true] %s555
          %558 = dma.vmem_to_hbm [thread:$0]  %s556, 128, %s553, [#allocation11]
        $region64: #{tpu_custom_call.1} parent=35 // pred_fallthru
          _
        // Predicated region
        $region65: #{tpu_custom_call.1} parent=35 // pred_check
          %p559 = pneg %p174
        $region66: #{tpu_custom_call.1} parent=35 // pred_check_branch
          %561 = sbr.rel (%p559) target = $region68
        $region67: #{tpu_custom_call.1} parent=35 // pred_region
          %562 = dma.done [#allocation11], 128
        $region68: #{tpu_custom_call.1} parent=35 // pred_fallthru
          _
      $region36: #{tpu_custom_call.1} parent=5 // pred_fallthru
        _
      %p563 = scmp.le.s32.totalorder 2, %s20
      // Predicated region
      $region69: #{tpu_custom_call.1} parent=5 // pred_check
        %p564 = pneg %p563
      $region70: #{tpu_custom_call.1} parent=5 // pred_check_branch
        %566 = sbr.rel (%p564) target = $region72
      $region71: #{tpu_custom_call.1} parent=5 // pred_region
        %s567 = ssub.s32 %s20, 2
        // Predicated region
        $region73: #{tpu_custom_call.1} parent=71 // pred_check
          %p568 = pneg %p154
        $region74: #{tpu_custom_call.1} parent=71 // pred_check_branch
          %570 = sbr.rel (%p568) target = $region76
        $region75: #{tpu_custom_call.1} parent=71 // pred_region
          %s571 = sand.u32 %s139, 1
          %s572 = scalar_lea.sflag [#allocation5], %s571
          %s573 = sand.u32 %s139, 1
          %s574 = smul.addr %s573, 8
          %s575 = scalar_lea.vmem [#allocation9], %s574
          %576 = dma.done %s572, 128
        $region76: #{tpu_custom_call.1} parent=71 // pred_fallthru
          _
      $region72: #{tpu_custom_call.1} parent=5 // pred_fallthru
        _
    $region6: #{tpu_custom_call.1} parent=1 // loop_footer
      %s24 = sadd.s32 1, %s20
    $region7: #{tpu_custom_call.1} parent=1 // loop_footer_branch
      %19 = sbr.rel target = $region3
    $region8: #{tpu_custom_call.1} parent=1 // loop_exit
      _
    %577 = vsyncpa [#allocation4], 1
    %s578 = scalar_lea.sflag [#allocation4], 1
    %579 = vsyncpa %s578, 1
    %580 = vsyncpa [#allocation7], 1
    %581 = vsyncpa [#allocation5], 1
    %s582 = scalar_lea.sflag [#allocation5], 1
    %583 = vsyncpa %s582, 1
    %584 = vsyncpa [#allocation11], 1

</llo_original>
